<compile_context>
chip_gen: v7x
topology: tpu7x:2x2x1
jax: 0.10.0
libtpu: 0.0.40
codegen_flags: <defaults>
</compile_context>

<pallas_src>
import functools

import jax
import jax.numpy as jnp
from jax.experimental import pallas as pl
from jax.experimental.pallas import tpu as pltpu

H1, H2, H3 = 40, 20, 4          # layer widths of Q_network: in -> 40 -> 20 -> 4

_MAX_BATCH_TILE = 2048          # lane-axis batch tile; multiple of 256 (v6e/v7x MXU)
_SINGLE_TILE_MAX = 1024         # below this, one grid step covers the whole batch


def _round_up(n, m):
    return ((n + m - 1) // m) * m


def _mlp_kernel(k_ref, x_ref, w1_ref, b1_ref, w2_ref, b2_ref, w3_ref, b3_ref,
                o_ref):
    # Transposed orientation:
    #   x_ref : (d_in, TB)     w*_ref : (out, in)     b*_ref : (out, 1)
    #   o_ref : (4, TB)
    # Batch is on lanes, so every load / intermediate / store is lane-dense.
    del k_ref  # head selection already happened in the index_maps (DMA)
    x = x_ref[...]
    h1 = jnp.dot(w1_ref[...], x, preferred_element_type=jnp.float32) + b1_ref[...]
    h1 = jnp.maximum(h1, 0.0)                       # (40, TB) f32
    h2 = jnp.dot(w2_ref[...], h1, preferred_element_type=jnp.float32) + b2_ref[...]
    h2 = jnp.maximum(h2, 0.0)                       # (20, TB) f32
    o_ref[...] = (jnp.dot(w3_ref[...], h2, preferred_element_type=jnp.float32)
                  + b3_ref[...]).astype(o_ref.dtype)


@functools.partial(jax.jit, static_argnames=("use_bf16",))
def bootstrapped_forward(x, k_idx, w1, b1, w2, b2, w3, b3, use_bf16=True):
    """Run the k-th Q-network head on x (== Bootstrapped_network.forward(x, k)).

    x  : [B, D_in] float32
    k_idx : int32 scalar head index (clamped to [0, K-1])
    w1 : [K, 40, D_in]  b1 : [K, 40, 1]    (PyTorch nn.Linear (out, in) layout)
    w2 : [K, 20, 40]    b2 : [K, 20, 1]
    w3 : [K,  4, 20]    b3 : [K,  4, 1]
    returns: [B, 4] float32

    use_bf16=True (default) casts x and the weights to bf16 at the kernel
    boundary (f32 accumulation, f32 biases/activations) -- the recommended fast
    path on v6e/v7x.  Set use_bf16=False for exact f32 module semantics.
    """
    B, d_in = x.shape
    K = w1.shape[0]
    cdtype = jnp.bfloat16 if use_bf16 else jnp.float32

    # Clamp the head index so an out-of-range k cannot drive an OOB weight DMA.
    k_scalar = jnp.clip(jnp.asarray(k_idx, dtype=jnp.int32), 0, K - 1).reshape((1,))

    # Batch tile policy (batch lives on the lane axis):
    #  * B <= _SINGLE_TILE_MAX: one grid step (minimal per-step overhead; best on
    #    single-TC v5e/v6e, and a second TC would not help at these sizes).
    #  * larger B: tiles up to _MAX_BATCH_TILE, rounded to 256, capped so the
    #    grid always has >= 2 steps -> "parallel" axis shards across v7x's 2 TCs.
    if B <= _SINGLE_TILE_MAX:
        tb = B
    else:
        tb = min(_MAX_BATCH_TILE, _round_up(pl.cdiv(B, 2), 256))
    b_pad = _round_up(B, tb)
    grid = (b_pad // tb,)

    # Stage x as a lane-dense (d_in, B) slab; the ragged-batch pad fuses into
    # this transpose copy (no separate pad round-trip through HBM).
    xt = x.astype(cdtype).T
    if b_pad != B:
        xt = jnp.pad(xt, ((0, 0), (0, b_pad - B)))

    w1c, w2c, w3c = (w.astype(cdtype) for w in (w1, w2, w3))
    b1c, b2c, b3c = (b.astype(jnp.float32) for b in (b1, b2, b3))

    # index_maps: grid index i, then the scalar-prefetch ref (positional).
    def x_map(i, kref):            # batch tile i (also used for the output)
        return (0, i)

    def w_map(i, kref):            # pick head kref[0]; grid-invariant across i
        return (kref[0], 0, 0)

    flops = 2 * b_pad * (d_in * H1 + H1 * H2 + H2 * H3)
    bytes_accessed = (xt.dtype.itemsize * b_pad * d_in
                      + 4 * b_pad * H3
                      + w1c.dtype.itemsize * (d_in * H1 + H1 * H2 + H2 * H3)
                      + 4 * (H1 + H2 + H3))

    grid_spec = pltpu.PrefetchScalarGridSpec(
        num_scalar_prefetch=1,
        grid=grid,
        in_specs=[
            pl.BlockSpec((d_in, tb), x_map),                    # x^T tile
            pl.BlockSpec((pl.Squeezed(), H1, d_in), w_map),     # w1 -> (40, d_in)
            pl.BlockSpec((pl.Squeezed(), H1, 1), w_map),        # b1 -> (40, 1)
            pl.BlockSpec((pl.Squeezed(), H2, H1), w_map),       # w2 -> (20, 40)
            pl.BlockSpec((pl.Squeezed(), H2, 1), w_map),        # b2 -> (20, 1)
            pl.BlockSpec((pl.Squeezed(), H3, H2), w_map),       # w3 -> (4, 20)
            pl.BlockSpec((pl.Squeezed(), H3, 1), w_map),        # b3 -> (4, 1)
        ],
        out_specs=pl.BlockSpec((H3, tb), x_map),
    )

    out_t = pl.pallas_call(
        _mlp_kernel,
        out_shape=jax.ShapeDtypeStruct((H3, b_pad), jnp.float32),
        grid_spec=grid_spec,
        compiler_params=pltpu.CompilerParams(
            dimension_semantics=("parallel",)),
        cost_estimate=pl.CostEstimate(
            flops=flops, transcendentals=0, bytes_accessed=bytes_accessed),
    )(k_scalar, xt, w1c, b1c, w2c, b2c, w3c, b3c)

    if b_pad != B:
        out_t = out_t[:, :B]
    return out_t.T                                   # (B, 4): tiny transpose back


def init_params(key, k_heads, input_size):
    """Deterministic init for K stacked Q_networks (PyTorch (out, in) layout)."""
    keys = jax.random.split(key, 6)

    def uinit(kk, shape, fan_in):
        # mimic torch.nn.Linear default: U(-1/sqrt(fan_in), 1/sqrt(fan_in))
        bound = 1.0 / jnp.sqrt(jnp.float32(fan_in))
        return jax.random.uniform(kk, shape, jnp.float32, -bound, bound)

    w1 = uinit(keys[0], (k_heads, H1, input_size), input_size)
    b1 = uinit(keys[1], (k_heads, H1, 1), input_size)
    w2 = uinit(keys[2], (k_heads, H2, H1), H1)
    b2 = uinit(keys[3], (k_heads, H2, 1), H1)
    w3 = uinit(keys[4], (k_heads, H3, H2), H2)
    b3 = uinit(keys[5], (k_heads, H3, 1), H2)
    return w1, b1, w2, b2, w3, b3


def reference_forward(x, k, params, use_bf16=False):
    """Plain-JAX reference (mirrors the kernel's boundary cast when use_bf16)."""
    w1, b1, w2, b2, w3, b3 = params
    cd = jnp.bfloat16 if use_bf16 else jnp.float32
    xf = x.astype(cd).astype(jnp.float32)
    wk = [w[k].astype(cd).astype(jnp.float32) for w in (w1, w2, w3)]
    bk = [b[k][:, 0] for b in (b1, b2, b3)]
    h1 = jnp.maximum(xf @ wk[0].T + bk[0], 0.0)
    h2 = jnp.maximum(h1 @ wk[1].T + bk[1], 0.0)
    return h2 @ wk[2].T + bk[2]


if __name__ == "__main__":
    key = jax.random.PRNGKey(0)
    k_heads = 3
    input_size = 32

    pkey, xkey, xkey2, xkey3 = jax.random.split(key, 4)
    params = init_params(pkey, k_heads, input_size)

    # Small batch, exact f32 path: single grid step, check every head.
    batch = 8
    x = jax.random.normal(xkey, (batch, input_size), dtype=jnp.float32)
    for head in range(k_heads):
        out = bootstrapped_forward(x, jnp.int32(head), *params, use_bf16=False)
        out = jax.block_until_ready(out)
        ref = reference_forward(x, head, params, use_bf16=False)
        assert out.shape == (batch, H3)
        assert jnp.allclose(out, ref, atol=1e-5, rtol=1e-5), f"mismatch head {head}"

    # Small batch, default bf16 fast path (compared vs bf16-mirrored reference).
    out_bf = jax.block_until_ready(bootstrapped_forward(x, jnp.int32(1), *params))
    ref_bf = reference_forward(x, 1, params, use_bf16=True)
    assert jnp.allclose(out_bf, ref_bf, atol=1e-4, rtol=1e-4), "mismatch bf16 small"

    # Ragged medium batch, f32 path: still a single grid step, no padding needed.
    batch2 = 200
    x2 = jax.random.normal(xkey2, (batch2, input_size), dtype=jnp.float32)
    out2 = jax.block_until_ready(
        bootstrapped_forward(x2, jnp.int32(2), *params, use_bf16=False))
    ref2 = reference_forward(x2, 2, params, use_bf16=False)
    assert out2.shape == (batch2, H3)
    assert jnp.allclose(out2, ref2, atol=1e-5, rtol=1e-5), "mismatch medium batch"

    # Large batch: exercises the multi-tile "parallel" grid (>= 2 steps for the
    # two v7x TensorCores), fused pad of the ragged tail, bf16 fast path.
    batch3 = 4000
    x3 = jax.random.normal(xkey3, (batch3, input_size), dtype=jnp.float32)
    out3 = jax.block_until_ready(bootstrapped_forward(x3, jnp.int32(0), *params))
    ref3 = reference_forward(x3, 0, params, use_bf16=True)
    assert out3.shape == (batch3, H3)
    assert jnp.allclose(out3, ref3, atol=1e-4, rtol=1e-4), "mismatch large batch"

    print("KERNEL_OK")
</pallas_src>

<mosaic_0001>
module attributes {stable_mosaic.version = 11 : i64} {
  func.func @_mlp_kernel(%arg0: i32, %arg1: memref<1xi32, #tpu.memory_space<smem>>, %arg2: memref<32x8xf32, #tpu.memory_space<vmem>>, %arg3: memref<1x40x32xf32, #tpu.memory_space<vmem>>, %arg4: memref<1x40x1xf32, #tpu.memory_space<vmem>>, %arg5: memref<1x20x40xf32, #tpu.memory_space<vmem>>, %arg6: memref<1x20x1xf32, #tpu.memory_space<vmem>>, %arg7: memref<1x4x20xf32, #tpu.memory_space<vmem>>, %arg8: memref<1x4x1xf32, #tpu.memory_space<vmem>>, %arg9: memref<4x8xf32, #tpu.memory_space<vmem>>) attributes {dimension_semantics = [#tpu.dimension_semantics<parallel>], iteration_bounds = array<i64: 1>, scalar_prefetch = 1 : i64, scratch_operands = 0 : i64, tpu.core_type = #tpu.core_type<tc>, window_params = [{transform_indices = @transform_0, window_bounds = array<i64: 32, 8>}, {transform_indices = @transform_1, window_bounds = array<i64: 1, 40, 32>}, {transform_indices = @transform_2, window_bounds = array<i64: 1, 40, 1>}, {transform_indices = @transform_3, window_bounds = array<i64: 1, 20, 40>}, {transform_indices = @transform_4, window_bounds = array<i64: 1, 20, 1>}, {transform_indices = @transform_5, window_bounds = array<i64: 1, 4, 20>}, {transform_indices = @transform_6, window_bounds = array<i64: 1, 4, 1>}, {transform_indices = @transform_7, window_bounds = array<i64: 4, 8>}]} {
    %c0 = arith.constant 0 : index
    %c0_0 = arith.constant 0 : index
    %0 = vector.load %arg2[%c0, %c0_0] : memref<32x8xf32, #tpu.memory_space<vmem>>, vector<32x8xf32>
    %c0_1 = arith.constant 0 : index
    %c0_2 = arith.constant 0 : index
    %c0_3 = arith.constant 0 : index
    %1 = vector.load %arg3[%c0_1, %c0_2, %c0_3] : memref<1x40x32xf32, #tpu.memory_space<vmem>>, vector<1x40x32xf32>
    %2 = vector.shape_cast %1 : vector<1x40x32xf32> to vector<40x32xf32>
    %cst = arith.constant dense<0.000000e+00> : vector<40x8xf32>
    %3 = tpu.matmul %2, %0, %cst {dimension_numbers = #tpu.dot_dimension_numbers<[1], [0], [0], [1], [0, 0, 1, 1], [], []>} : vector<40x32xf32>, vector<32x8xf32>, vector<40x8xf32> -> vector<40x8xf32>
    %c0_4 = arith.constant 0 : index
    %c0_5 = arith.constant 0 : index
    %c0_6 = arith.constant 0 : index
    %4 = vector.load %arg4[%c0_4, %c0_5, %c0_6] : memref<1x40x1xf32, #tpu.memory_space<vmem>>, vector<1x40x1xf32>
    %5 = vector.shape_cast %4 : vector<1x40x1xf32> to vector<40x1xf32>
    %6 = vector.broadcast %5 : vector<40x1xf32> to vector<40x8xf32>
    %7 = arith.addf %3, %6 : vector<40x8xf32>
    %cst_7 = arith.constant 0.000000e+00 : f32
    %8 = vector.broadcast %cst_7 : f32 to vector<40x8xf32>
    %9 = arith.maximumf %7, %8 : vector<40x8xf32>
    %c0_8 = arith.constant 0 : index
    %c0_9 = arith.constant 0 : index
    %c0_10 = arith.constant 0 : index
    %10 = vector.load %arg5[%c0_8, %c0_9, %c0_10] : memref<1x20x40xf32, #tpu.memory_space<vmem>>, vector<1x20x40xf32>
    %11 = vector.shape_cast %10 : vector<1x20x40xf32> to vector<20x40xf32>
    %cst_11 = arith.constant dense<0.000000e+00> : vector<20x8xf32>
    %12 = tpu.matmul %11, %9, %cst_11 {dimension_numbers = #tpu.dot_dimension_numbers<[1], [0], [0], [1], [0, 0, 1, 1], [], []>} : vector<20x40xf32>, vector<40x8xf32>, vector<20x8xf32> -> vector<20x8xf32>
    %c0_12 = arith.constant 0 : index
    %c0_13 = arith.constant 0 : index
    %c0_14 = arith.constant 0 : index
    %13 = vector.load %arg6[%c0_12, %c0_13, %c0_14] : memref<1x20x1xf32, #tpu.memory_space<vmem>>, vector<1x20x1xf32>
    %14 = vector.shape_cast %13 : vector<1x20x1xf32> to vector<20x1xf32>
    %15 = vector.broadcast %14 : vector<20x1xf32> to vector<20x8xf32>
    %16 = arith.addf %12, %15 : vector<20x8xf32>
    %cst_15 = arith.constant 0.000000e+00 : f32
    %17 = vector.broadcast %cst_15 : f32 to vector<20x8xf32>
    %18 = arith.maximumf %16, %17 : vector<20x8xf32>
    %c0_16 = arith.constant 0 : index
    %c0_17 = arith.constant 0 : index
    %c0_18 = arith.constant 0 : index
    %19 = vector.load %arg7[%c0_16, %c0_17, %c0_18] : memref<1x4x20xf32, #tpu.memory_space<vmem>>, vector<1x4x20xf32>
    %20 = vector.shape_cast %19 : vector<1x4x20xf32> to vector<4x20xf32>
    %cst_19 = arith.constant dense<0.000000e+00> : vector<4x8xf32>
    %21 = tpu.matmul %20, %18, %cst_19 {dimension_numbers = #tpu.dot_dimension_numbers<[1], [0], [0], [1], [0, 0, 1, 1], [], []>} : vector<4x20xf32>, vector<20x8xf32>, vector<4x8xf32> -> vector<4x8xf32>
    %c0_20 = arith.constant 0 : index
    %c0_21 = arith.constant 0 : index
    %c0_22 = arith.constant 0 : index
    %22 = vector.load %arg8[%c0_20, %c0_21, %c0_22] : memref<1x4x1xf32, #tpu.memory_space<vmem>>, vector<1x4x1xf32>
    %23 = vector.shape_cast %22 : vector<1x4x1xf32> to vector<4x1xf32>
    %24 = vector.broadcast %23 : vector<4x1xf32> to vector<4x8xf32>
    %25 = arith.addf %21, %24 : vector<4x8xf32>
    %c0_23 = arith.constant 0 : index
    %c0_24 = arith.constant 0 : index
    %26 = vector.load %arg9[%c0_23, %c0_24] : memref<4x8xf32, #tpu.memory_space<vmem>>, vector<4x8xf32>
    tpu.vector_store %arg9[%c0_23, %c0_24], %25 {strides = array<i32>} : memref<4x8xf32, #tpu.memory_space<vmem>>, vector<4x8xf32>,
    return
  }
  func.func @transform_0(%arg0: i32, %arg1: memref<1xi32, #tpu.memory_space<smem>>) -> (i32, i32) {
    %c0_i32 = arith.constant 0 : i32
    %c0_i32_0 = arith.constant 0 : i32
    return %c0_i32, %arg0 : i32, i32
  }
  func.func @transform_1(%arg0: i32, %arg1: memref<1xi32, #tpu.memory_space<smem>>) -> (i32, i32, i32) {
    %c0 = arith.constant 0 : index
    %0 = memref.load %arg1[%c0] : memref<1xi32, #tpu.memory_space<smem>>
    %c0_i32 = arith.constant 0 : i32
    %c0_i32_0 = arith.constant 0 : i32
    %c0_i32_1 = arith.constant 0 : i32
    return %0, %c0_i32, %c0_i32_0 : i32, i32, i32
  }
  func.func @transform_2(%arg0: i32, %arg1: memref<1xi32, #tpu.memory_space<smem>>) -> (i32, i32, i32) {
    %c0 = arith.constant 0 : index
    %0 = memref.load %arg1[%c0] : memref<1xi32, #tpu.memory_space<smem>>
    %c0_i32 = arith.constant 0 : i32
    %c0_i32_0 = arith.constant 0 : i32
    %c0_i32_1 = arith.constant 0 : i32
    return %0, %c0_i32, %c0_i32_0 : i32, i32, i32
  }
  func.func @transform_3(%arg0: i32, %arg1: memref<1xi32, #tpu.memory_space<smem>>) -> (i32, i32, i32) {
    %c0 = arith.constant 0 : index
    %0 = memref.load %arg1[%c0] : memref<1xi32, #tpu.memory_space<smem>>
    %c0_i32 = arith.constant 0 : i32
    %c0_i32_0 = arith.constant 0 : i32
    %c0_i32_1 = arith.constant 0 : i32
    return %0, %c0_i32, %c0_i32_0 : i32, i32, i32
  }
  func.func @transform_4(%arg0: i32, %arg1: memref<1xi32, #tpu.memory_space<smem>>) -> (i32, i32, i32) {
    %c0 = arith.constant 0 : index
    %0 = memref.load %arg1[%c0] : memref<1xi32, #tpu.memory_space<smem>>
    %c0_i32 = arith.constant 0 : i32
    %c0_i32_0 = arith.constant 0 : i32
    %c0_i32_1 = arith.constant 0 : i32
    return %0, %c0_i32, %c0_i32_0 : i32, i32, i32
  }
  func.func @transform_5(%arg0: i32, %arg1: memref<1xi32, #tpu.memory_space<smem>>) -> (i32, i32, i32) {
    %c0 = arith.constant 0 : index
    %0 = memref.load %arg1[%c0] : memref<1xi32, #tpu.memory_space<smem>>
    %c0_i32 = arith.constant 0 : i32
    %c0_i32_0 = arith.constant 0 : i32
    %c0_i32_1 = arith.constant 0 : i32
    return %0, %c0_i32, %c0_i32_0 : i32, i32, i32
  }
  func.func @transform_6(%arg0: i32, %arg1: memref<1xi32, #tpu.memory_space<smem>>) -> (i32, i32, i32) {
    %c0 = arith.constant 0 : index
    %0 = memref.load %arg1[%c0] : memref<1xi32, #tpu.memory_space<smem>>
    %c0_i32 = arith.constant 0 : i32
    %c0_i32_0 = arith.constant 0 : i32
    %c0_i32_1 = arith.constant 0 : i32
    return %0, %c0_i32, %c0_i32_0 : i32, i32, i32
  }
  func.func @transform_7(%arg0: i32, %arg1: memref<1xi32, #tpu.memory_space<smem>>) -> (i32, i32) {
    %c0_i32 = arith.constant 0 : i32
    %c0_i32_0 = arith.constant 0 : i32
    return %c0_i32, %arg0 : i32, i32
  }
}

</mosaic_0001>

<llo_original>
// kernel: bootstrapped_forward.1
$region0: #{bootstrapped_forward.1}
  #allocation0 [shape = 'u32[]', space=smem, size = 0x4, offset = 0x4, fixed_abs, tag = 'smem constant byte address 0x4 - core index']
  #allocation1 [shape = 'u32[144,128]{1,0:T(1,128)}', space=vmem, size = 0x12000, scoped, tag = 'internal scratch']
  #allocation2 [shape = 's32[1]{0}', space=sflag, size = 0x4, scoped, tag = 'scoped memory for bootstrapped_forward.1']
  #allocation3 [shape = 's32[1]{0:T(128)S(6)}', space=smem, size = 0x200, scoped, tag = 'prefetched SMEM operand 0']
  %s0 = inlined_call_operand.<no memory space> [shape: s32[1], index: 0, kind: input, shape index: {}]
  %s1 = inlined_call_operand.vmem [shape: f32[32,8], index: 1, kind: input, shape index: {}]
  %s2 = inlined_call_operand.vmem [shape: f32[3,40,32], index: 2, kind: input, shape index: {}]
  %s3 = inlined_call_operand.vmem [shape: f32[3,40,1], index: 3, kind: input, shape index: {}]
  %s4 = inlined_call_operand.vmem [shape: f32[3,20,40], index: 4, kind: input, shape index: {}]
  %s5 = inlined_call_operand.vmem [shape: f32[3,20,1], index: 5, kind: input, shape index: {}]
  %s6 = inlined_call_operand.vmem [shape: f32[3,4,20], index: 6, kind: input, shape index: {}]
  %s7 = inlined_call_operand.vmem [shape: f32[3,4,1], index: 7, kind: input, shape index: {}]
  %s8 = inlined_call_operand.hbm [shape: f32[4,8], index: 8, kind: output, shape index: {}]
  %s9 = sld [smem:[#allocation0]]
  $region38: #{bootstrapped_forward.1} parent=0
    _
  %s11 = ssub.s32 1, %s9
  %s12 = scalar_select 0, %s11, %s9
  %13 = sst [smem:[#allocation3]] %s0
  $region1: #{bootstrapped_forward.1} parent=0
    #allocation4 [shape = 'u8[2048]{0}', space=vmem, size = 0x800, scoped, tag = 'output window, operand 0, single buffered']
    #allocation5 [shape = 's32[1]{0}', space=sflag, size = 0x4, scoped, tag = 'scoped memory for bootstrapped_forward.1']
    %14 = vsyncpa [#allocation5], 0
    // Predicated region
    $region2: #{bootstrapped_forward.1} parent=1 // pred_check
      _
    $region3: #{bootstrapped_forward.1} parent=1 // pred_check_branch
      %16 = sbr.rel (0) target = $region5
    $region4: #{bootstrapped_forward.1} parent=1 // pred_region
      _
    $region5: #{bootstrapped_forward.1} parent=1 // pred_fallthru
      _
    // Predicated region
    $region6: #{bootstrapped_forward.1} parent=1 // pred_check
      _
    $region7: #{bootstrapped_forward.1} parent=1 // pred_check_branch
      %18 = sbr.rel (0) target = $region9
    $region8: #{bootstrapped_forward.1} parent=1 // pred_region
      %s19 = sld [smem:[#allocation3]]
      %p20 = scmp.lt.s32.totalorder %s19, 2
      %s21 = scalar_select %p20, %s19, 2
      %s22 = smul.addr %s21, 5
      %s23 = smul.addr %s22, 8
      %s24 = scalar_lea.vmem %s2, %s23
      %s25 = sld [smem:[#allocation3]]
    $region9: #{bootstrapped_forward.1} parent=1 // pred_fallthru
      _
    // Predicated region
    $region10: #{bootstrapped_forward.1} parent=1 // pred_check
      _
    $region11: #{bootstrapped_forward.1} parent=1 // pred_check_branch
      %27 = sbr.rel (0) target = $region13
    $region12: #{bootstrapped_forward.1} parent=1 // pred_region
      %s28 = sld [smem:[#allocation3]]
      %p29 = scmp.lt.s32.totalorder %s28, 2
      %s30 = scalar_select %p29, %s28, 2
      %s31 = smul.addr %s30, 5
      %s32 = smul.addr %s31, 8
      %s33 = scalar_lea.vmem %s3, %s32
      %s34 = sld [smem:[#allocation3]]
    $region13: #{bootstrapped_forward.1} parent=1 // pred_fallthru
      _
    // Predicated region
    $region14: #{bootstrapped_forward.1} parent=1 // pred_check
      _
    $region15: #{bootstrapped_forward.1} parent=1 // pred_check_branch
      %36 = sbr.rel (0) target = $region17
    $region16: #{bootstrapped_forward.1} parent=1 // pred_region
      %s37 = sld [smem:[#allocation3]]
      %p38 = scmp.lt.s32.totalorder %s37, 2
      %s39 = scalar_select %p38, %s37, 2
      %s40 = smul.addr %s39, 3
      %s41 = smul.addr %s40, 8
      %s42 = scalar_lea.vmem %s4, %s41
      %s43 = sld [smem:[#allocation3]]
    $region17: #{bootstrapped_forward.1} parent=1 // pred_fallthru
      _
    // Predicated region
    $region18: #{bootstrapped_forward.1} parent=1 // pred_check
      _
    $region19: #{bootstrapped_forward.1} parent=1 // pred_check_branch
      %45 = sbr.rel (0) target = $region21
    $region20: #{bootstrapped_forward.1} parent=1 // pred_region
      %s46 = sld [smem:[#allocation3]]
      %p47 = scmp.lt.s32.totalorder %s46, 2
      %s48 = scalar_select %p47, %s46, 2
      %s49 = smul.addr %s48, 3
      %s50 = smul.addr %s49, 8
      %s51 = scalar_lea.vmem %s5, %s50
      %s52 = sld [smem:[#allocation3]]
    $region21: #{bootstrapped_forward.1} parent=1 // pred_fallthru
      _
    // Predicated region
    $region22: #{bootstrapped_forward.1} parent=1 // pred_check
      _
    $region23: #{bootstrapped_forward.1} parent=1 // pred_check_branch
      %54 = sbr.rel (0) target = $region25
    $region24: #{bootstrapped_forward.1} parent=1 // pred_region
      %s55 = sld [smem:[#allocation3]]
      %p56 = scmp.lt.s32.totalorder %s55, 2
      %s57 = scalar_select %p56, %s55, 2
      %s58 = smul.addr %s57, 4
      %s59 = scalar_lea.vmem %s6, %s58
      %s60 = sld [smem:[#allocation3]]
    $region25: #{bootstrapped_forward.1} parent=1 // pred_fallthru
      _
    // Predicated region
    $region26: #{bootstrapped_forward.1} parent=1 // pred_check
      _
    $region27: #{bootstrapped_forward.1} parent=1 // pred_check_branch
      %62 = sbr.rel (0) target = $region29
    $region28: #{bootstrapped_forward.1} parent=1 // pred_region
      %s63 = sld [smem:[#allocation3]]
      %p64 = scmp.lt.s32.totalorder %s63, 2
      %s65 = scalar_select %p64, %s63, 2
      %s66 = smul.addr %s65, 4
      %s67 = scalar_lea.vmem %s7, %s66
      %s68 = sld [smem:[#allocation3]]
    $region29: #{bootstrapped_forward.1} parent=1 // pred_fallthru
      _
    %s69 = sld [smem:[#allocation3]]
    %p70 = scmp.lt.s32.totalorder %s69, 2
    %s71 = scalar_select %p70, %s69, 2
    %s72 = smul.addr %s71, 5
    %s73 = smul.addr %s72, 8
    %s74 = scalar_lea.vmem %s2, %s73
    %s75 = sld [smem:[#allocation3]]
    %p76 = scmp.lt.s32.totalorder %s75, 2
    %s77 = scalar_select %p76, %s75, 2
    %s78 = smul.addr %s77, 5
    %s79 = smul.addr %s78, 8
    %s80 = scalar_lea.vmem %s3, %s79
    %s81 = sld [smem:[#allocation3]]
    %p82 = scmp.lt.s32.totalorder %s81, 2
    %s83 = scalar_select %p82, %s81, 2
    %s84 = smul.addr %s83, 3
    %s85 = smul.addr %s84, 8
    %s86 = scalar_lea.vmem %s4, %s85
    %s87 = sld [smem:[#allocation3]]
    %p88 = scmp.lt.s32.totalorder %s87, 2
    %s89 = scalar_select %p88, %s87, 2
    %s90 = smul.addr %s89, 3
    %s91 = smul.addr %s90, 8
    %s92 = scalar_lea.vmem %s5, %s91
    %s93 = sld [smem:[#allocation3]]
    %p94 = scmp.lt.s32.totalorder %s93, 2
    %s95 = scalar_select %p94, %s93, 2
    %s96 = smul.addr %s95, 4
    %s97 = scalar_lea.vmem %s6, %s96
    %s98 = sld [smem:[#allocation3]]
    %p99 = scmp.lt.s32.totalorder %s98, 2
    %s100 = scalar_select %p99, %s98, 2
    %s101 = smul.addr %s100, 4
    %s102 = scalar_lea.vmem %s7, %s101
    %s103 = sld [smem:[#allocation3]]
    %p104 = scmp.lt.s32.totalorder %s103, 2
    %s105 = scalar_select %p104, %s103, 2
    %s106 = smul.addr %s105, 5
    %s107 = smul.addr %s106, 8
    %s108 = scalar_lea.vmem %s2, %s107
    %s109 = sld [smem:[#allocation3]]
    %s110 = sld [smem:[#allocation3]]
    %p111 = scmp.lt.s32.totalorder %s110, 2
    %s112 = scalar_select %p111, %s110, 2
    %s113 = smul.addr %s112, 5
    %s114 = smul.addr %s113, 8
    %s115 = scalar_lea.vmem %s3, %s114
    %s116 = sld [smem:[#allocation3]]
    %s117 = sld [smem:[#allocation3]]
    %p118 = scmp.lt.s32.totalorder %s117, 2
    %s119 = scalar_select %p118, %s117, 2
    %s120 = smul.addr %s119, 3
    %s121 = smul.addr %s120, 8
    %s122 = scalar_lea.vmem %s4, %s121
    %s123 = sld [smem:[#allocation3]]
    %s124 = sld [smem:[#allocation3]]
    %p125 = scmp.lt.s32.totalorder %s124, 2
    %s126 = scalar_select %p125, %s124, 2
    %s127 = smul.addr %s126, 3
    %s128 = smul.addr %s127, 8
    %s129 = scalar_lea.vmem %s5, %s128
    %s130 = sld [smem:[#allocation3]]
    %s131 = sld [smem:[#allocation3]]
    %p132 = scmp.lt.s32.totalorder %s131, 2
    %s133 = scalar_select %p132, %s131, 2
    %s134 = smul.addr %s133, 4
    %s135 = scalar_lea.vmem %s6, %s134
    %s136 = sld [smem:[#allocation3]]
    %s137 = sld [smem:[#allocation3]]
    %p138 = scmp.lt.s32.totalorder %s137, 2
    %s139 = scalar_select %p138, %s137, 2
    %s140 = smul.addr %s139, 4
    %s141 = scalar_lea.vmem %s7, %s140
    %s142 = sld [smem:[#allocation3]]
    %v143 = vld [vmem:[%s1] sm:$0xff]
    %v144 = vld [vmem:[%s1 + $0x8] sm:$0xff]
    %v145 = vld [vmem:[%s1 + $0x10] sm:$0xff]
    %v146 = vld [vmem:[%s1 + $0x18] sm:$0xff]
    %v147 = vld [vmem:[%s108] sm:$0xff]
    %v148 = vld [vmem:[%s108 + $0x8] sm:$0xff]
    %v149 = vld [vmem:[%s108 + $0x10] sm:$0xff]
    %v150 = vld [vmem:[%s108 + $0x18] sm:$0xff]
    %v151 = vld [vmem:[%s108 + $0x20] sm:$0xff]
    %v152 = vld [vmem:[%s115] sm:$0xff]
    %v153 = vld [vmem:[%s115 + $0x8] sm:$0xff]
    %v154 = vld [vmem:[%s115 + $0x10] sm:$0xff]
    %v155 = vld [vmem:[%s115 + $0x18] sm:$0xff]
    %v156 = vld [vmem:[%s115 + $0x20] sm:$0xff]
    %158 = vset.pattern.permute.xlu0 0
    %159 = vperm.xlu0 %158, %v152
    %v160 = vpop.permute.xlu0 %159
    %163 = vset.pattern.permute.xlu0 0
    %164 = vperm.xlu0 %163, %v153
    %v165 = vpop.permute.xlu0 %164
    %168 = vset.pattern.permute.xlu0 0
    %169 = vperm.xlu0 %168, %v154
    %v170 = vpop.permute.xlu0 %169
    %173 = vset.pattern.permute.xlu0 0
    %174 = vperm.xlu0 %173, %v155
    %v175 = vpop.permute.xlu0 %174
    %178 = vset.pattern.permute.xlu0 0
    %179 = vperm.xlu0 %178, %v156
    %v180 = vpop.permute.xlu0 %179
    %vm182 = vcmask 261120
    %v184 = vsel %vm182, %v147, 0
    %v187 = vsel %vm182, %v148, 0
    %v190 = vsel %vm182, %v149, 0
    %v193 = vsel %vm182, %v150, 0
    %v196 = vsel %vm182, %v151, 0
    %198 = vmatprep.subr.mxu0 0.0
    %199 = vmatpush1.msra.mxu0 %v143
    %200 = vmatprep.subr.mxu0 0.0
    %201 = vmatpush1.msra.mxu0 %v144
    %202 = vmatprep.subr.mxu0 0.0
    %203 = vmatpush1.msra.mxu0 %v145
    %204 = vmatprep.subr.mxu0 0.0
    %205 = vmatpush1.msra.mxu0 %v146
    %206 = vmatprep.subr.mxu0 0.0
    %207 = vmatpush1.msra.mxu0 0.0
    %208 = vmatprep.subr.mxu0 0.0
    %209 = vmatpush1.msra.mxu0 0.0
    %210 = vmatprep.subr.mxu0 0.0
    %211 = vmatpush1.msra.mxu0 0.0
    %212 = vmatprep.subr.mxu0 0.0
    %213 = vmatpush1.msra.mxu0 0.0
    %214 = vmatprep.subr.mxu0 0.0
    %215 = vmatpush1.msra.mxu0 0.0
    %216 = vmatprep.subr.mxu0 0.0
    %217 = vmatpush1.msra.mxu0 0.0
    %218 = vmatprep.subr.mxu0 0.0
    %219 = vmatpush1.msra.mxu0 0.0
    %220 = vmatprep.subr.mxu0 0.0
    %221 = vmatpush1.msra.mxu0 0.0
    %222 = vmatprep.subr.mxu0 0.0
    %223 = vmatpush1.msra.mxu0 0.0
    %224 = vmatprep.subr.mxu0 0.0
    %225 = vmatpush1.msra.mxu0 0.0
    %226 = vmatprep.subr.mxu0 0.0
    %227 = vmatpush1.msra.mxu0 0.0
    %228 = vmatprep.subr.mxu0 0.0
    %229 = vmatpush1.msra.mxu0 0.0
    %230 = vmatprep.subr.mxu0 0.0
    %231 = vmatpush1.msra.mxu0 0.0
    %232 = vmatprep.subr.mxu0 0.0
    %233 = vmatpush1.msra.mxu0 0.0
    %234 = vmatprep.subr.mxu0 0.0
    %235 = vmatpush1.msra.mxu0 0.0
    %236 = vmatprep.subr.mxu0 0.0
    %237 = vmatpush1.msra.mxu0 0.0
    %238 = vmatprep.subr.mxu0 0.0
    %239 = vmatpush1.msra.mxu0 0.0
    %240 = vmatprep.subr.mxu0 0.0
    %241 = vmatpush1.msra.mxu0 0.0
    %242 = vmatprep.subr.mxu0 0.0
    %243 = vmatpush1.msra.mxu0 0.0
    %244 = vmatprep.subr.mxu0 0.0
    %245 = vmatpush1.msra.mxu0 0.0
    %246 = vmatprep.subr.mxu0 0.0
    %247 = vmatpush1.msra.mxu0 0.0
    %248 = vmatprep.subr.mxu0 0.0
    %249 = vmatpush1.msra.mxu0 0.0
    %250 = vmatprep.subr.mxu0 0.0
    %251 = vmatpush1.msra.mxu0 0.0
    %252 = vmatprep.subr.mxu0 0.0
    %253 = vmatpush1.msra.mxu0 0.0
    %254 = vmatprep.subr.mxu0 0.0
    %255 = vmatpush1.msra.mxu0 0.0
    %256 = vmatprep.subr.mxu0 0.0
    %257 = vmatpush1.msra.mxu0 0.0
    %258 = vmatprep.subr.mxu0 0.0
    %259 = vmatpush1.msra.mxu0 0.0
    %260 = vmatprep.subr.mxu0 0.0
    %261 = vmatpush1.msra.mxu0 0.0
    %262 = vmatprep.mubr.f32.mxu0 0.0
    %263 = vmatmul.mubr.f32.gmra.mrb[0].mxu0 %v184
    %v264 = vpop.f32.mrb[0].mxu0
    %v265 = vadd.f32 %v160, %v264
    %v266 = vpop.f32.mrb[0].mxu0
    %267 = vmatprep.mubr.f32.mxu0 0.0
    %268 = vmatmul.mubr.f32.gmra.mrb[0].mxu0 %v187
    %v269 = vpop.f32.mrb[0].mxu0
    %v270 = vadd.f32 %v165, %v269
    %v271 = vpop.f32.mrb[0].mxu0
    %272 = vmatprep.mubr.f32.mxu0 0.0
    %273 = vmatmul.mubr.f32.gmra.mrb[0].mxu0 %v190
    %v274 = vpop.f32.mrb[0].mxu0
    %v275 = vadd.f32 %v170, %v274
    %v276 = vpop.f32.mrb[0].mxu0
    %277 = vmatprep.mubr.f32.mxu0 0.0
    %278 = vmatmul.mubr.f32.gmra.mrb[0].mxu0 %v193
    %v279 = vpop.f32.mrb[0].mxu0
    %v280 = vadd.f32 %v175, %v279
    %v281 = vpop.f32.mrb[0].mxu0
    %282 = vmatprep.mubr.f32.mxu0 0.0
    %283 = vmatmul.mubr.f32.gmra.mrb[0].mxu0 %v196
    %v284 = vpop.f32.mrb[0].mxu0
    %v285 = vadd.f32 %v180, %v284
    %v286 = vpop.f32.mrb[0].mxu0
    %287 = vdwg.mxu0
    %v288 = vmax.f32 %v265, 0.0
    %v289 = vmax.f32 %v270, 0.0
    %v290 = vmax.f32 %v275, 0.0
    %v291 = vmax.f32 %v280, 0.0
    %v292 = vmax.f32 %v285, 0.0
    %v293 = vld [vmem:[%s122] sm:$0xff]
    %v294 = vld [vmem:[%s122 + $0x8] sm:$0xff]
    %v295 = vld [vmem:[%s122 + $0x10] sm:$0xf]
    %v296 = vld [vmem:[%s129] sm:$0xff]
    %v297 = vld [vmem:[%s129 + $0x8] sm:$0xff]
    %v298 = vld [vmem:[%s129 + $0x10] sm:$0xf]
    %300 = vset.pattern.permute.xlu0 0
    %301 = vperm.xlu0 %300, %v296
    %v302 = vpop.permute.xlu0 %301
    %305 = vset.pattern.permute.xlu0 0
    %306 = vperm.xlu0 %305, %v297
    %v307 = vpop.permute.xlu0 %306
    %310 = vset.pattern.permute.xlu0 0
    %311 = vperm.xlu0 %310, %v298
    %v312 = vpop.permute.xlu0 %311
    %vm314 = vcmask 326656
    %v316 = vsel %vm314, %v293, 0
    %v319 = vsel %vm314, %v294, 0
    %v322 = vsel %vm314, %v295, 0
    %324 = vmatprep.subr.mxu0 0.0
    %325 = vmatpush1.msra.mxu0 %v288
    %326 = vmatprep.subr.mxu0 0.0
    %327 = vmatpush1.msra.mxu0 %v289
    %328 = vmatprep.subr.mxu0 0.0
    %329 = vmatpush1.msra.mxu0 %v290
    %330 = vmatprep.subr.mxu0 0.0
    %331 = vmatpush1.msra.mxu0 %v291
    %332 = vmatprep.subr.mxu0 0.0
    %333 = vmatpush1.msra.mxu0 %v292
    %334 = vmatprep.subr.mxu0 0.0
    %335 = vmatpush1.msra.mxu0 0.0
    %336 = vmatprep.subr.mxu0 0.0
    %337 = vmatpush1.msra.mxu0 0.0
    %338 = vmatprep.subr.mxu0 0.0
    %339 = vmatpush1.msra.mxu0 0.0
    %340 = vmatprep.subr.mxu0 0.0
    %341 = vmatpush1.msra.mxu0 0.0
    %342 = vmatprep.subr.mxu0 0.0
    %343 = vmatpush1.msra.mxu0 0.0
    %344 = vmatprep.subr.mxu0 0.0
    %345 = vmatpush1.msra.mxu0 0.0
    %346 = vmatprep.subr.mxu0 0.0
    %347 = vmatpush1.msra.mxu0 0.0
    %348 = vmatprep.subr.mxu0 0.0
    %349 = vmatpush1.msra.mxu0 0.0
    %350 = vmatprep.subr.mxu0 0.0
    %351 = vmatpush1.msra.mxu0 0.0
    %352 = vmatprep.subr.mxu0 0.0
    %353 = vmatpush1.msra.mxu0 0.0
    %354 = vmatprep.subr.mxu0 0.0
    %355 = vmatpush1.msra.mxu0 0.0
    %356 = vmatprep.subr.mxu0 0.0
    %357 = vmatpush1.msra.mxu0 0.0
    %358 = vmatprep.subr.mxu0 0.0
    %359 = vmatpush1.msra.mxu0 0.0
    %360 = vmatprep.subr.mxu0 0.0
    %361 = vmatpush1.msra.mxu0 0.0
    %362 = vmatprep.subr.mxu0 0.0
    %363 = vmatpush1.msra.mxu0 0.0
    %364 = vmatprep.subr.mxu0 0.0
    %365 = vmatpush1.msra.mxu0 0.0
    %366 = vmatprep.subr.mxu0 0.0
    %367 = vmatpush1.msra.mxu0 0.0
    %368 = vmatprep.subr.mxu0 0.0
    %369 = vmatpush1.msra.mxu0 0.0
    %370 = vmatprep.subr.mxu0 0.0
    %371 = vmatpush1.msra.mxu0 0.0
    %372 = vmatprep.subr.mxu0 0.0
    %373 = vmatpush1.msra.mxu0 0.0
    %374 = vmatprep.subr.mxu0 0.0
    %375 = vmatpush1.msra.mxu0 0.0
    %376 = vmatprep.subr.mxu0 0.0
    %377 = vmatpush1.msra.mxu0 0.0
    %378 = vmatprep.subr.mxu0 0.0
    %379 = vmatpush1.msra.mxu0 0.0
    %380 = vmatprep.subr.mxu0 0.0
    %381 = vmatpush1.msra.mxu0 0.0
    %382 = vmatprep.subr.mxu0 0.0
    %383 = vmatpush1.msra.mxu0 0.0
    %384 = vmatprep.subr.mxu0 0.0
    %385 = vmatpush1.msra.mxu0 0.0
    %386 = vmatprep.subr.mxu0 0.0
    %387 = vmatpush1.msra.mxu0 0.0
    %388 = vmatprep.mubr.f32.mxu0 0.0
    %389 = vmatmul.mubr.f32.gmra.mrb[0].mxu0 %v316
    %v390 = vpop.f32.mrb[0].mxu0
    %v391 = vadd.f32 %v302, %v390
    %v392 = vpop.f32.mrb[0].mxu0
    %393 = vmatprep.mubr.f32.mxu0 0.0
    %394 = vmatmul.mubr.f32.gmra.mrb[0].mxu0 %v319
    %v395 = vpop.f32.mrb[0].mxu0
    %v396 = vadd.f32 %v307, %v395
    %v397 = vpop.f32.mrb[0].mxu0
    %398 = vmatprep.mubr.f32.mxu0 0.0
    %399 = vmatmul.mubr.f32.gmra.mrb[0].mxu0 %v322
    %v400 = vpop.f32.mrb[0].mxu0
    %v401 = vadd.f32 %v312, %v400
    %v402 = vpop.f32.mrb[0].mxu0
    %403 = vdwg.mxu0
    %v404 = vmax.f32 %v391, 0.0
    %v405 = vmax.f32 %v396, 0.0
    %v406 = vmax.f32 %v401, 0.0
    %v407 = vld [vmem:[%s135] sm:$0xf]
    %v408 = vld [vmem:[%s141] sm:$0xf]
    %410 = vset.pattern.permute.xlu0 0
    %411 = vperm.xlu0 %410, %v408
    %v412 = vpop.permute.xlu0 %411
    %vm414 = vcmask 162816
    %v416 = vsel %vm414, %v407, 0
    %vm418 = vcmask 1043456
    %v420 = vsel %vm418, %v406, 0
    %422 = vmatprep.subr.mxu0 0.0
    %423 = vmatpush1.msra.mxu0 %v404
    %424 = vmatprep.subr.mxu0 0.0
    %425 = vmatpush1.msra.mxu0 %v405
    %426 = vmatprep.subr.mxu0 0.0
    %427 = vmatpush1.msra.mxu0 %v420
    %428 = vmatprep.subr.mxu0 0.0
    %429 = vmatpush1.msra.mxu0 0.0
    %430 = vmatprep.subr.mxu0 0.0
    %431 = vmatpush1.msra.mxu0 0.0
    %432 = vmatprep.subr.mxu0 0.0
    %433 = vmatpush1.msra.mxu0 0.0
    %434 = vmatprep.subr.mxu0 0.0
    %435 = vmatpush1.msra.mxu0 0.0
    %436 = vmatprep.subr.mxu0 0.0
    %437 = vmatpush1.msra.mxu0 0.0
    %438 = vmatprep.subr.mxu0 0.0
    %439 = vmatpush1.msra.mxu0 0.0
    %440 = vmatprep.subr.mxu0 0.0
    %441 = vmatpush1.msra.mxu0 0.0
    %442 = vmatprep.subr.mxu0 0.0
    %443 = vmatpush1.msra.mxu0 0.0
    %444 = vmatprep.subr.mxu0 0.0
    %445 = vmatpush1.msra.mxu0 0.0
    %446 = vmatprep.subr.mxu0 0.0
    %447 = vmatpush1.msra.mxu0 0.0
    %448 = vmatprep.subr.mxu0 0.0
    %449 = vmatpush1.msra.mxu0 0.0
    %450 = vmatprep.subr.mxu0 0.0
    %451 = vmatpush1.msra.mxu0 0.0
    %452 = vmatprep.subr.mxu0 0.0
    %453 = vmatpush1.msra.mxu0 0.0
    %454 = vmatprep.subr.mxu0 0.0
    %455 = vmatpush1.msra.mxu0 0.0
    %456 = vmatprep.subr.mxu0 0.0
    %457 = vmatpush1.msra.mxu0 0.0
    %458 = vmatprep.subr.mxu0 0.0
    %459 = vmatpush1.msra.mxu0 0.0
    %460 = vmatprep.subr.mxu0 0.0
    %461 = vmatpush1.msra.mxu0 0.0
    %462 = vmatprep.subr.mxu0 0.0
    %463 = vmatpush1.msra.mxu0 0.0
    %464 = vmatprep.subr.mxu0 0.0
    %465 = vmatpush1.msra.mxu0 0.0
    %466 = vmatprep.subr.mxu0 0.0
    %467 = vmatpush1.msra.mxu0 0.0
    %468 = vmatprep.subr.mxu0 0.0
    %469 = vmatpush1.msra.mxu0 0.0
    %470 = vmatprep.subr.mxu0 0.0
    %471 = vmatpush1.msra.mxu0 0.0
    %472 = vmatprep.subr.mxu0 0.0
    %473 = vmatpush1.msra.mxu0 0.0
    %474 = vmatprep.subr.mxu0 0.0
    %475 = vmatpush1.msra.mxu0 0.0
    %476 = vmatprep.subr.mxu0 0.0
    %477 = vmatpush1.msra.mxu0 0.0
    %478 = vmatprep.subr.mxu0 0.0
    %479 = vmatpush1.msra.mxu0 0.0
    %480 = vmatprep.subr.mxu0 0.0
    %481 = vmatpush1.msra.mxu0 0.0
    %482 = vmatprep.subr.mxu0 0.0
    %483 = vmatpush1.msra.mxu0 0.0
    %484 = vmatprep.subr.mxu0 0.0
    %485 = vmatpush1.msra.mxu0 0.0
    %486 = vmatprep.mubr.f32.mxu0 0.0
    %487 = vmatmul.mubr.f32.gmra.mrb[0].mxu0 %v416
    %v488 = vpop.f32.mrb[0].mxu0
    %v489 = vadd.f32 %v412, %v488
    %v490 = vpop.f32.mrb[0].mxu0
    %491 = vdwg.mxu0
    %vm492 = vcmask 60416
    %493 = vst.msk [vmem:[#allocation4] sm:$0xf] %vm492, %v489
    // Predicated region
    $region30: #{bootstrapped_forward.1} parent=1 // pred_check
      _
    $region31: #{bootstrapped_forward.1} parent=1 // pred_check_branch
      %495 = sbr.rel (0) target = $region33
    $region32: #{bootstrapped_forward.1} parent=1 // pred_region
      %s497 = ssub.s32 64, 64
      %498 = vsyncadd [#allocation5], %s497
      %s500 = sshll.u32 [#allocation4], 4
      %s501 = int_to_ptr.vmem [resolvable:$true] %s500
      %503 = dma.vmem_to_hbm [thread:$0]  %s501, 64, %s8, [#allocation5]
    $region33: #{bootstrapped_forward.1} parent=1 // pred_fallthru
      _
    // Predicated region
    $region34: #{bootstrapped_forward.1} parent=1 // pred_check
      _
    $region35: #{bootstrapped_forward.1} parent=1 // pred_check_branch
      %505 = sbr.rel (0) target = $region37
    $region36: #{bootstrapped_forward.1} parent=1 // pred_region
      %506 = dma.done [#allocation5], 64
    $region37: #{bootstrapped_forward.1} parent=1 // pred_fallthru
      _
    %507 = vsyncpa [#allocation5], 1

</llo_original>
